<compile_context>
chip_gen: v6e
topology: v6e:2x2x1
jax: 0.10.0
libtpu: 0.0.40
codegen_flags: <defaults>
</compile_context>

<pallas_src>
from types import SimpleNamespace

import jax
import jax.numpy as jnp
import numpy as np
from jax import lax
from jax.experimental import pallas as pl
from jax.experimental.pallas import tpu as pltpu


def _soft_ce_kernel(logits_ref, labels_ref, out_ref):
    """Per-sample CE against 3 candidate labels.

    logits_ref: (TM, C) float (any dtype; upcast to f32 inside)
    labels_ref: (TM, 3) int32
    out_ref:    (TM, 3) float32   out[i, j] = CE(logits[i], labels[i, j])
    """
    x = logits_ref[...].astype(jnp.float32)                        # (TM, C)
    m = jnp.max(x, axis=-1, keepdims=True)                         # (TM, 1)
    e = jnp.exp(x - m)
    lse = m + jnp.log(jnp.sum(e, axis=-1, keepdims=True))          # (TM, 1)

    col = lax.broadcasted_iota(jnp.int32, x.shape, 1)               # (TM, C)
    labels = labels_ref[...]                                        # (TM, 3)

    ces = []
    for j in range(3):
        lab = labels[:, j:j + 1]                                    # (TM, 1)
        picked = jnp.sum(jnp.where(col == lab, x, 0.0),
                         axis=-1, keepdims=True)                    # (TM, 1)
        ces.append(lse - picked)
    # Single full-tile store (was: three masked 1-lane column stores).
    out_ref[...] = jnp.concatenate(ces, axis=-1)                    # (TM, 3)


def _pick_tile_and_vmem_limit(C, N):
    """Choose row tile + scoped VMEM limit from the chip's VMEM capacity."""
    try:
        vmem_bytes = int(pltpu.get_tpu_info().vmem_capacity_bytes)
    except Exception:
        vmem_bytes = 64 * 1024 * 1024          # conservative fallback (v7x)

    # Budget ~1/10 of VMEM for one f32 (tm, C) working block, leaving room for
    # the double-buffered input, exp temp, labels/output tiles and compiler
    # scratch regardless of chip generation.
    per_block_budget = vmem_bytes // 10
    tm = per_block_budget // max(C * 4, 1)
    tm = min(tm, 1024)

    # Don't over-pad tiny batches; keep at least 2 grid steps for megacore
    # sharding (v7x) when the batch allows it.
    n_pad32 = ((N + 31) // 32) * 32
    if n_pad32 > 256:
        half = ((((n_pad32 + 1) // 2) + 31) // 32) * 32
        tm = min(tm, half)
    else:
        tm = min(tm, n_pad32)

    # Multiple of 32 keeps f32/bf16/int8 sublane packing (8/16/32) clean.
    tm = max(32, (tm // 32) * 32)

    # Raise the scoped VMEM limit above the 16/32 MiB defaults, but stay well
    # under physical capacity (v7x: 64 MiB, v5e/v6e: 128 MiB).
    vmem_limit = int(vmem_bytes * 3 // 4)
    return tm, vmem_limit


def per_sample_ce3(logits, partial_labels, *, tm=None):
    """Returns (N, 3) float32 of per-sample cross entropies via Pallas."""
    N, C = logits.shape
    auto_tm, vmem_limit = _pick_tile_and_vmem_limit(C, N)
    if tm is None:
        tm = auto_tm
    labels = partial_labels.astype(jnp.int32)

    # Pad the batch to a tile multiple (pad rows are sliced off below), so tm
    # can be chosen for the hardware instead of for divisibility.
    n_pad = -(-N // tm) * tm
    if n_pad != N:
        logits = jnp.pad(logits, ((0, n_pad - N), (0, 0)))
        labels = jnp.pad(labels, ((0, n_pad - N), (0, 0)))

    out = pl.pallas_call(
        _soft_ce_kernel,
        out_shape=jax.ShapeDtypeStruct((n_pad, 3), jnp.float32),
        grid_spec=pltpu.PrefetchScalarGridSpec(
            num_scalar_prefetch=0,
            grid=(n_pad // tm,),
            in_specs=[
                pl.BlockSpec((tm, C), lambda i: (i, 0)),
                pl.BlockSpec((tm, 3), lambda i: (i, 0)),
            ],
            out_specs=pl.BlockSpec((tm, 3), lambda i: (i, 0)),
        ),
        compiler_params=pltpu.CompilerParams(
            dimension_semantics=("parallel",),
            vmem_limit_bytes=vmem_limit),
    )(logits, labels)
    return out[:N]


def soft_ce_loss(logits, targets, partial_labels, *, soft_label="M", sl_alpha=0.7):
    """Forward of SoftCELoss. `targets` is unused (matches the PyTorch module)."""
    del targets
    N = logits.shape[0]
    l = per_sample_ce3(logits, partial_labels)           # (N, 3) per-sample CE
    p = partial_labels.astype(jnp.int32)                 # (N, 3)

    if soft_label == "M":
        # sum of three batch-mean CE losses, divided by 3
        return (jnp.mean(l[:, 0]) + jnp.mean(l[:, 1]) + jnp.mean(l[:, 2])) / 3.0

    elif soft_label == "W":
        alpha = jnp.float32(sl_alpha)
        l0, l1, l2 = l[:, 0], l[:, 1], l[:, 2]
        p0, p1, p2 = p[:, 0], p[:, 1], p[:, 2]
        w01 = alpha * (l0 + l1) / 2.0 + (1.0 - alpha) * l2
        w02 = alpha * (l0 + l2) / 2.0 + (1.0 - alpha) * l1
        w12 = alpha * (l1 + l2) / 2.0 + (1.0 - alpha) * l0
        m01, m02, m12 = (p0 == p1), (p0 == p2), (p1 == p2)
        has_match = m01 | m02 | m12
        cand = jnp.where(m01, w01, jnp.where(m02, w02, jnp.where(m12, w12, 0.0)))
        # Vectorized forward-fill: rows with no matching pair reuse the most
        # recent valid loss (replicates the original PyTorch control flow).
        # TODO(synk): original PyTorch raises NameError if the very first
        # sample has no matching pair; here the carried loss is seeded with 0.
        idx = jnp.arange(N, dtype=jnp.int32)
        last_valid = lax.cummax(jnp.where(has_match, idx, -1))
        filled = jnp.where(last_valid >= 0,
                           cand[jnp.maximum(last_valid, 0)],
                           jnp.float32(0.0))
        return jnp.sum(filled) / N

    else:
        raise ValueError(f"unknown soft_label mode: {soft_label}")


# ---------------------------- pure-JAX/numpy reference -----------------------
def _ref_ce_row(logits_row, label):
    m = np.max(logits_row)
    lse = m + np.log(np.sum(np.exp(logits_row - m)))
    return lse - logits_row[label]


def _ref_loss(logits, partial_labels, soft_label, alpha):
    logits = np.asarray(logits, np.float32)
    p = np.asarray(partial_labels)
    N = logits.shape[0]
    l = np.zeros((N, 3), np.float32)
    for i in range(N):
        for j in range(3):
            l[i, j] = _ref_ce_row(logits[i], int(p[i, j]))
    if soft_label == "M":
        return (l[:, 0].mean() + l[:, 1].mean() + l[:, 2].mean()) / 3.0
    total, prev = 0.0, 0.0
    for i in range(N):
        l0, l1, l2 = l[i]
        if p[i, 0] == p[i, 1]:
            loss = alpha * (l0 + l1) / 2 + (1 - alpha) * l2
        elif p[i, 0] == p[i, 2]:
            loss = alpha * (l0 + l2) / 2 + (1 - alpha) * l1
        elif p[i, 1] == p[i, 2]:
            loss = alpha * (l1 + l2) / 2 + (1 - alpha) * l0
        else:
            loss = prev
        prev = loss
        total += loss
    return total / N


if __name__ == "__main__":
    # Config mirroring the PyTorch module's expectations.
    config = SimpleNamespace(train=SimpleNamespace(soft_label="M", sl_alpha=0.7))

    key = jax.random.PRNGKey(0)
    k_logit, k_lab, k_tgt = jax.random.split(key, 3)

    N, C = 16, 32  # small shapes: batch=16, num_classes=32
    logits = jax.random.normal(k_logit, (N, C), dtype=jnp.float32)
    partial_labels = jax.random.randint(k_lab, (N, 3), 0, C, dtype=jnp.int32)
    # Guarantee the first half of the batch has a matching label pair; leave
    # the rest random so the W-mode forward-fill path is exercised.
    partial_labels = partial_labels.at[: N // 2, 1].set(partial_labels[: N // 2, 0])
    targets = jax.random.randint(k_tgt, (N,), 0, C, dtype=jnp.int32)

    # Mode 'M'
    loss_m = soft_ce_loss(logits, targets, partial_labels,
                          soft_label="M", sl_alpha=config.train.sl_alpha)
    loss_m = jax.block_until_ready(loss_m)

    # Mode 'W'
    loss_w = soft_ce_loss(logits, targets, partial_labels,
                          soft_label="W", sl_alpha=config.train.sl_alpha)
    loss_w = jax.block_until_ready(loss_w)

    ref_m = _ref_loss(logits, partial_labels, "M", config.train.sl_alpha)
    ref_w = _ref_loss(logits, partial_labels, "W", config.train.sl_alpha)
    assert np.allclose(float(loss_m), float(ref_m), rtol=1e-5, atol=1e-5), (loss_m, ref_m)
    assert np.allclose(float(loss_w), float(ref_w), rtol=1e-5, atol=1e-5), (loss_w, ref_w)

    print("KERNEL_OK")
</pallas_src>

<mosaic_0001>
module attributes {stable_mosaic.version = 11 : i64} {
  func.func @_soft_ce_kernel(%arg0: i32, %arg1: memref<32x32xf32, #tpu.memory_space<vmem>>, %arg2: memref<32x3xi32, #tpu.memory_space<vmem>>, %arg3: memref<32x3xf32, #tpu.memory_space<vmem>>) attributes {dimension_semantics = [#tpu.dimension_semantics<parallel>], iteration_bounds = array<i64: 1>, scalar_prefetch = 0 : i64, scratch_operands = 0 : i64, tpu.core_type = #tpu.core_type<tc>, window_params = [{transform_indices = @transform_0, window_bounds = array<i64: 32, 32>}, {transform_indices = @transform_1, window_bounds = array<i64: 32, 3>}, {transform_indices = @transform_2, window_bounds = array<i64: 32, 3>}]} {
    %c0 = arith.constant 0 : index
    %c0_0 = arith.constant 0 : index
    %0 = vector.load %arg1[%c0, %c0_0] : memref<32x32xf32, #tpu.memory_space<vmem>>, vector<32x32xf32>
    %cst = arith.constant dense<0xFF800000> : vector<32xf32>
    %1 = vector.multi_reduction <maximumf>, %0, %cst [1] : vector<32x32xf32> to vector<32xf32>
    %2 = vector.shape_cast %1 : vector<32xf32> to vector<32x1xf32>
    %3 = vector.broadcast %2 : vector<32x1xf32> to vector<32x32xf32>
    %4 = arith.subf %0, %3 : vector<32x32xf32>
    %5 = math.exp %4 : vector<32x32xf32>
    %cst_1 = arith.constant dense<0.000000e+00> : vector<32xf32>
    %6 = vector.multi_reduction <add>, %5, %cst_1 [1] : vector<32x32xf32> to vector<32xf32>
    %7 = vector.shape_cast %6 : vector<32xf32> to vector<32x1xf32>
    %8 = math.log %7 : vector<32x1xf32>
    %9 = arith.addf %2, %8 : vector<32x1xf32>
    %10 = tpu.iota {dimensions = array<i32: 1>} : vector<32x32xi32>
    %c0_2 = arith.constant 0 : index
    %c0_3 = arith.constant 0 : index
    %11 = vector.load %arg2[%c0_2, %c0_3] : memref<32x3xi32, #tpu.memory_space<vmem>>, vector<32x3xi32>
    %12 = vector.extract_strided_slice %11 {offsets = [0, 0], sizes = [32, 1], strides = [1, 1]} : vector<32x3xi32> to vector<32x1xi32>
    %13 = vector.broadcast %12 : vector<32x1xi32> to vector<32x32xi32>
    %14 = arith.cmpi eq, %10, %13 : vector<32x32xi32>
    %cst_4 = arith.constant 0.000000e+00 : f32
    %15 = vector.broadcast %cst_4 : f32 to vector<32x32xf32>
    %16 = arith.select %14, %0, %15 : vector<32x32xi1>, vector<32x32xf32>
    %cst_5 = arith.constant dense<0.000000e+00> : vector<32xf32>
    %17 = vector.multi_reduction <add>, %16, %cst_5 [1] : vector<32x32xf32> to vector<32xf32>
    %18 = vector.shape_cast %17 : vector<32xf32> to vector<32x1xf32>
    %19 = arith.subf %9, %18 : vector<32x1xf32>
    %20 = vector.extract_strided_slice %11 {offsets = [0, 1], sizes = [32, 1], strides = [1, 1]} : vector<32x3xi32> to vector<32x1xi32>
    %21 = vector.broadcast %20 : vector<32x1xi32> to vector<32x32xi32>
    %22 = arith.cmpi eq, %10, %21 : vector<32x32xi32>
    %cst_6 = arith.constant 0.000000e+00 : f32
    %23 = vector.broadcast %cst_6 : f32 to vector<32x32xf32>
    %24 = arith.select %22, %0, %23 : vector<32x32xi1>, vector<32x32xf32>
    %cst_7 = arith.constant dense<0.000000e+00> : vector<32xf32>
    %25 = vector.multi_reduction <add>, %24, %cst_7 [1] : vector<32x32xf32> to vector<32xf32>
    %26 = vector.shape_cast %25 : vector<32xf32> to vector<32x1xf32>
    %27 = arith.subf %9, %26 : vector<32x1xf32>
    %28 = vector.extract_strided_slice %11 {offsets = [0, 2], sizes = [32, 1], strides = [1, 1]} : vector<32x3xi32> to vector<32x1xi32>
    %29 = vector.broadcast %28 : vector<32x1xi32> to vector<32x32xi32>
    %30 = arith.cmpi eq, %10, %29 : vector<32x32xi32>
    %cst_8 = arith.constant 0.000000e+00 : f32
    %31 = vector.broadcast %cst_8 : f32 to vector<32x32xf32>
    %32 = arith.select %30, %0, %31 : vector<32x32xi1>, vector<32x32xf32>
    %cst_9 = arith.constant dense<0.000000e+00> : vector<32xf32>
    %33 = vector.multi_reduction <add>, %32, %cst_9 [1] : vector<32x32xf32> to vector<32xf32>
    %34 = vector.shape_cast %33 : vector<32xf32> to vector<32x1xf32>
    %35 = arith.subf %9, %34 : vector<32x1xf32>
    %36 = tpu.concatenate %19, %27, %35 in 1 : vector<32x1xf32>, vector<32x1xf32>, vector<32x1xf32> -> vector<32x3xf32>
    %c0_10 = arith.constant 0 : index
    %c0_11 = arith.constant 0 : index
    %37 = vector.load %arg3[%c0_10, %c0_11] : memref<32x3xf32, #tpu.memory_space<vmem>>, vector<32x3xf32>
    tpu.vector_store %arg3[%c0_10, %c0_11], %36 {strides = array<i32>} : memref<32x3xf32, #tpu.memory_space<vmem>>, vector<32x3xf32>,
    return
  }
  func.func @transform_0(%arg0: i32) -> (i32, i32) {
    %c0_i32 = arith.constant 0 : i32
    %c0_i32_0 = arith.constant 0 : i32
    return %arg0, %c0_i32 : i32, i32
  }
  func.func @transform_1(%arg0: i32) -> (i32, i32) {
    %c0_i32 = arith.constant 0 : i32
    %c0_i32_0 = arith.constant 0 : i32
    return %arg0, %c0_i32 : i32, i32
  }
  func.func @transform_2(%arg0: i32) -> (i32, i32) {
    %c0_i32 = arith.constant 0 : i32
    %c0_i32_0 = arith.constant 0 : i32
    return %arg0, %c0_i32 : i32, i32
  }
}

</mosaic_0001>

<llo_original>
// kernel: tpu_custom_call.1
$region0: #{tpu_custom_call.1}
  #allocation0 [shape = 'u32[]', space=smem, size = 0x4, offset = 0x4, fixed_abs, tag = 'smem constant byte address 0x4 - core index']
  #allocation1 [shape = 'u32[144,128]{1,0:T(1,128)}', space=vmem, size = 0x12000, scoped, tag = 'internal scratch']
  %s0 = inlined_call_operand.vmem [shape: f32[32,32], index: 0, kind: input, shape index: {}]
  %s1 = inlined_call_operand.vmem [shape: s32[32,3], index: 1, kind: input, shape index: {}]
  %s2 = inlined_call_operand.vmem [shape: f32[32,3], index: 2, kind: output, shape index: {}]
  %s3 = sld [smem:[#allocation0]]
  $region18: #{tpu_custom_call.1} parent=0
    _
  %s5 = ssub.s32 1, %s3
  %s6 = scalar_select 0, %s5, %s3
  // Predicated region
  $region2: #{tpu_custom_call.1} parent=0 // pred_check
    _
  $region3: #{tpu_custom_call.1} parent=0 // pred_check_branch
    %8 = sbr.rel (0) target = $region5
  $region4: #{tpu_custom_call.1} parent=0 // pred_region
    _
  $region5: #{tpu_custom_call.1} parent=0 // pred_fallthru
    _
  // Predicated region
  $region6: #{tpu_custom_call.1} parent=0 // pred_check
    _
  $region7: #{tpu_custom_call.1} parent=0 // pred_check_branch
    %10 = sbr.rel (0) target = $region9
  $region8: #{tpu_custom_call.1} parent=0 // pred_region
    _
  $region9: #{tpu_custom_call.1} parent=0 // pred_fallthru
    _
  %v11 = vld [vmem:[%s0] sm:$0xff]
  %v12 = vld [vmem:[%s0 + $0x8] sm:$0xff]
  %v13 = vld [vmem:[%s0 + $0x10] sm:$0xff]
  %v14 = vld [vmem:[%s0 + $0x18] sm:$0xff]
  %vm15 = vcmask 261120
  %v16 = vsel %vm15, %v11, -inf
  %17 = vmax.xlane.f32.xlu0 %v16
  %v18 = vpop.xlane.xlu0 %17
  %v19 = vsel %vm15, %v12, -inf
  %20 = vmax.xlane.f32.xlu0 %v19
  %v21 = vpop.xlane.xlu0 %20
  %v22 = vsel %vm15, %v13, -inf
  %23 = vmax.xlane.f32.xlu0 %v22
  %v24 = vpop.xlane.xlu0 %23
  %v25 = vsel %vm15, %v14, -inf
  %26 = vmax.xlane.f32.xlu0 %v25
  %v27 = vpop.xlane.xlu0 %26
  %v28 = vsub.f32 %v11, %v18
  %v29 = vsub.f32 %v12, %v21
  %v30 = vsub.f32 %v13, %v24
  %v31 = vsub.f32 %v14, %v27
  %v32 = vmul.f32 %v28, 1.442695
  %v33 = vpow.pop %v32
  %v34 = vmul.f32 %v29, 1.442695
  %v35 = vpow.pop %v34
  %v36 = vmul.f32 %v30, 1.442695
  %v37 = vpow.pop %v36
  %v38 = vmul.f32 %v31, 1.442695
  %v39 = vpow.pop %v38
  %v40 = vsel %vm15, %v33, 0.0
  %41 = vadd.xlane.f32.xlu0 %v40
  %v42 = vpop.xlane.xlu0 %41
  %v43 = vsel %vm15, %v35, 0.0
  %44 = vadd.xlane.f32.xlu0 %v43
  %v45 = vpop.xlane.xlu0 %44
  %v46 = vsel %vm15, %v37, 0.0
  %47 = vadd.xlane.f32.xlu0 %v46
  %v48 = vpop.xlane.xlu0 %47
  %v49 = vsel %vm15, %v39, 0.0
  %50 = vadd.xlane.f32.xlu0 %v49
  %v51 = vpop.xlane.xlu0 %50
  %v52 = vlog2.pop %v42
  %v53 = vmul.f32 %v52, 0.6931472
  %v54 = vlog2.pop %v45
  %v55 = vmul.f32 %v54, 0.6931472
  %v56 = vlog2.pop %v48
  %v57 = vmul.f32 %v56, 0.6931472
  %v58 = vlog2.pop %v51
  %v59 = vmul.f32 %v58, 0.6931472
  %v60 = vadd.f32 %v18, %v53
  %v61 = vadd.f32 %v21, %v55
  %v62 = vadd.f32 %v24, %v57
  %v63 = vadd.f32 %v27, %v59
  %v64 = vlaneseq
  %v65 = vand.u32 %v64, 127
  %v66 = vld [vmem:[%s1] sm:$0xff]
  %v67 = vld [vmem:[%s1 + $0x8] sm:$0xff]
  %v68 = vld [vmem:[%s1 + $0x10] sm:$0xff]
  %v69 = vld [vmem:[%s1 + $0x18] sm:$0xff]
  %70 = vset.pattern.permute.xlu0 0
  %71 = vperm.xlu0 %70, %v66
  %v72 = vpop.permute.xlu0 %71
  %73 = vset.pattern.permute.xlu0 0
  %74 = vperm.xlu0 %73, %v67
  %v75 = vpop.permute.xlu0 %74
  %76 = vset.pattern.permute.xlu0 0
  %77 = vperm.xlu0 %76, %v68
  %v78 = vpop.permute.xlu0 %77
  %79 = vset.pattern.permute.xlu0 0
  %80 = vperm.xlu0 %79, %v69
  %v81 = vpop.permute.xlu0 %80
  %vm82 = vcmp.eq.s32.totalorder %v65, %v72
  %vm83 = vcmp.eq.s32.totalorder %v65, %v75
  %vm84 = vcmp.eq.s32.totalorder %v65, %v78
  %vm85 = vcmp.eq.s32.totalorder %v65, %v81
  %v86 = vsel %vm82, %v11, 0.0
  %v87 = vsel %vm83, %v12, 0.0
  %v88 = vsel %vm84, %v13, 0.0
  %v89 = vsel %vm85, %v14, 0.0
  %v90 = vsel %vm15, %v86, 0.0
  %91 = vadd.xlane.f32.xlu0 %v90
  %v92 = vpop.xlane.xlu0 %91
  %v93 = vsel %vm15, %v87, 0.0
  %94 = vadd.xlane.f32.xlu0 %v93
  %v95 = vpop.xlane.xlu0 %94
  %v96 = vsel %vm15, %v88, 0.0
  %97 = vadd.xlane.f32.xlu0 %v96
  %v98 = vpop.xlane.xlu0 %97
  %v99 = vsel %vm15, %v89, 0.0
  %100 = vadd.xlane.f32.xlu0 %v99
  %v101 = vpop.xlane.xlu0 %100
  %v102 = vsub.f32 %v60, %v92
  %v103 = vsub.f32 %v61, %v95
  %v104 = vsub.f32 %v62, %v98
  %v105 = vsub.f32 %v63, %v101
  %106 = vset.pattern.permute.xlu0 1
  %107 = vperm.xlu0 %106, %v66
  %v108 = vpop.permute.xlu0 %107
  %109 = vset.pattern.permute.xlu0 1
  %110 = vperm.xlu0 %109, %v67
  %v111 = vpop.permute.xlu0 %110
  %112 = vset.pattern.permute.xlu0 1
  %113 = vperm.xlu0 %112, %v68
  %v114 = vpop.permute.xlu0 %113
  %115 = vset.pattern.permute.xlu0 1
  %116 = vperm.xlu0 %115, %v69
  %v117 = vpop.permute.xlu0 %116
  %vm118 = vcmp.eq.s32.totalorder %v65, %v108
  %vm119 = vcmp.eq.s32.totalorder %v65, %v111
  %vm120 = vcmp.eq.s32.totalorder %v65, %v114
  %vm121 = vcmp.eq.s32.totalorder %v65, %v117
  %v122 = vsel %vm118, %v11, 0.0
  %v123 = vsel %vm119, %v12, 0.0
  %v124 = vsel %vm120, %v13, 0.0
  %v125 = vsel %vm121, %v14, 0.0
  %v126 = vsel %vm15, %v122, 0.0
  %127 = vadd.xlane.f32.xlu0 %v126
  %v128 = vpop.xlane.xlu0 %127
  %v129 = vsel %vm15, %v123, 0.0
  %130 = vadd.xlane.f32.xlu0 %v129
  %v131 = vpop.xlane.xlu0 %130
  %v132 = vsel %vm15, %v124, 0.0
  %133 = vadd.xlane.f32.xlu0 %v132
  %v134 = vpop.xlane.xlu0 %133
  %v135 = vsel %vm15, %v125, 0.0
  %136 = vadd.xlane.f32.xlu0 %v135
  %v137 = vpop.xlane.xlu0 %136
  %v138 = vsub.f32 %v60, %v128
  %v139 = vsub.f32 %v61, %v131
  %v140 = vsub.f32 %v62, %v134
  %v141 = vsub.f32 %v63, %v137
  %142 = vset.pattern.permute.xlu0 2
  %143 = vperm.xlu0 %142, %v66
  %v144 = vpop.permute.xlu0 %143
  %145 = vset.pattern.permute.xlu0 2
  %146 = vperm.xlu0 %145, %v67
  %v147 = vpop.permute.xlu0 %146
  %148 = vset.pattern.permute.xlu0 2
  %149 = vperm.xlu0 %148, %v68
  %v150 = vpop.permute.xlu0 %149
  %151 = vset.pattern.permute.xlu0 2
  %152 = vperm.xlu0 %151, %v69
  %v153 = vpop.permute.xlu0 %152
  %vm154 = vcmp.eq.s32.totalorder %v65, %v144
  %vm155 = vcmp.eq.s32.totalorder %v65, %v147
  %vm156 = vcmp.eq.s32.totalorder %v65, %v150
  %vm157 = vcmp.eq.s32.totalorder %v65, %v153
  %v158 = vsel %vm154, %v11, 0.0
  %v159 = vsel %vm155, %v12, 0.0
  %v160 = vsel %vm156, %v13, 0.0
  %v161 = vsel %vm157, %v14, 0.0
  %v162 = vsel %vm15, %v158, 0.0
  %163 = vadd.xlane.f32.xlu0 %v162
  %v164 = vpop.xlane.xlu0 %163
  %v165 = vsel %vm15, %v159, 0.0
  %166 = vadd.xlane.f32.xlu0 %v165
  %v167 = vpop.xlane.xlu0 %166
  %v168 = vsel %vm15, %v160, 0.0
  %169 = vadd.xlane.f32.xlu0 %v168
  %v170 = vpop.xlane.xlu0 %169
  %v171 = vsel %vm15, %v161, 0.0
  %172 = vadd.xlane.f32.xlu0 %v171
  %v173 = vpop.xlane.xlu0 %172
  %v174 = vsub.f32 %v60, %v164
  %v175 = vsub.f32 %v61, %v167
  %v176 = vsub.f32 %v62, %v170
  %v177 = vsub.f32 %v63, %v173
  %vm178 = vcmask 7168
  %v179 = vsel %vm178, %v102, %v138
  %v180 = vsel %vm178, %v103, %v139
  %v181 = vsel %vm178, %v104, %v140
  %v182 = vsel %vm178, %v105, %v141
  %vm183 = vcmask 15360
  %v184 = vsel %vm183, %v179, %v174
  %v185 = vsel %vm183, %v180, %v175
  %v186 = vsel %vm183, %v181, %v176
  %v187 = vsel %vm183, %v182, %v177
  %vm188 = vcmask 23552
  %189 = vst.msk [vmem:[%s2] sm:$0xff] %vm188, %v184
  %190 = vst.msk [vmem:[%s2 + $0x8] sm:$0xff] %vm188, %v185
  %191 = vst.msk [vmem:[%s2 + $0x10] sm:$0xff] %vm188, %v186
  %192 = vst.msk [vmem:[%s2 + $0x18] sm:$0xff] %vm188, %v187
  // Predicated region
  $region10: #{tpu_custom_call.1} parent=0 // pred_check
    _
  $region11: #{tpu_custom_call.1} parent=0 // pred_check_branch
    %194 = sbr.rel (0) target = $region13
  $region12: #{tpu_custom_call.1} parent=0 // pred_region
    _
  $region13: #{tpu_custom_call.1} parent=0 // pred_fallthru
    _
  // Predicated region
  $region14: #{tpu_custom_call.1} parent=0 // pred_check
    _
  $region15: #{tpu_custom_call.1} parent=0 // pred_check_branch
    %196 = sbr.rel (0) target = $region17
  $region16: #{tpu_custom_call.1} parent=0 // pred_region
    _
  $region17: #{tpu_custom_call.1} parent=0 // pred_fallthru
    _

</llo_original>
